<compile_context>
chip_gen: v5e
topology: v5e:2x2
jax: 0.10.0
libtpu: 0.0.40
codegen_flags: <defaults>
</compile_context>

<pallas_src>
import functools

import jax
import jax.numpy as jnp
from jax.experimental import pallas as pl
from jax.experimental.pallas import tpu as pltpu


LANE = 128        # TPU lane width (last-dim tile)
SUBLANE = 8       # TPU sublane width (second-to-last-dim tile)


def _round_up(n, m):
    return ((n + m - 1) // m) * m


def _mlp_kernel(x_ref, w1_ref, b1_ref, w2_ref, b2_ref, w3_ref, b3_ref, o_ref):
    # Layer 1: Linear + ReLU  (MXU matmul with f32 accumulation; bias + ReLU on the VPU).
    h = jnp.dot(x_ref[...], w1_ref[...], preferred_element_type=jnp.float32)
    h = jnp.maximum(h + b1_ref[...], 0.0)          # bias is (1, H) -> broadcasts over rows
    # Layer 2: Linear + ReLU
    h = jnp.dot(h, w2_ref[...], preferred_element_type=jnp.float32)
    h = jnp.maximum(h + b2_ref[...], 0.0)
    # Layer 3: Linear (Q-values, no activation).  Output block last dim == full array dim.
    q = jnp.dot(h, w3_ref[...], preferred_element_type=jnp.float32)
    o_ref[...] = (q + b3_ref[...]).astype(o_ref.dtype)


def choose_pack(obs_len, hidden_size, actions_n):
    """How many independent samples share one 128-lane vreg via block-diagonal weights (>= 1)."""
    return max(1, LANE // max(obs_len, hidden_size, actions_n))


def pack_params(params, pack):
    """One-time (outside the jitted hot path) block-diagonal packing of the weights.

    w: [in, out] -> block-diagonal of `pack` copies: [pack*in, pack*out]
    b: [1, out]  -> tiled:                            [1, pack*out]
    With pack == 1 this is an identity transform.
    """
    eye = jnp.eye(pack, dtype=jnp.float32)

    def blockdiag(w):
        return jnp.kron(eye, w)

    def tile_bias(b):
        return jnp.tile(b, (1, pack))

    return {
        "w1": blockdiag(params["w1"]), "b1": tile_bias(params["b1"]),
        "w2": blockdiag(params["w2"]), "b2": tile_bias(params["b2"]),
        "w3": blockdiag(params["w3"]), "b3": tile_bias(params["b3"]),
    }


@functools.partial(jax.jit, static_argnames=("tile_b",))
def q_network_forward(x, packed_params, *, tile_b=32768):
    """Fused 3-layer MLP forward pass (Pallas TPU kernel).

    x: [batch, obs_len] float32
    packed_params: output of pack_params() -- block-diagonal weights / tiled biases.
    tile_b: samples per grid step (pre-packing).
    returns: [batch, actions_n] float32
    """
    batch, obs_len = x.shape
    in_p = packed_params["w1"].shape[0]
    pack = in_p // obs_len
    hid_p = packed_params["w2"].shape[0]
    out_p = packed_params["w3"].shape[1]
    actions_n = out_p // pack

    # Pad batch only to a multiple of `pack` (at most pack-1 rows; NOT to the tile size).
    batch_r = _round_up(batch, pack)
    if batch_r != batch:
        x = jnp.pad(x, ((0, batch_r - batch), (0, 0)))
    rows = batch_r // pack
    xpk = x.reshape(rows, in_p)          # contiguous packing of `pack` samples per row

    # Packed-row tile: large enough to hide per-step overhead, >= 2 grid steps when possible
    # (v7x megacore), multiple of 8 sublanes unless it is the whole array.
    tbp = max(SUBLANE, ((max(tile_b, SUBLANE) // pack) // SUBLANE) * SUBLANE)
    if rows > SUBLANE:
        tbp = min(tbp, _round_up(pl.cdiv(rows, 2), SUBLANE))
    if tbp >= rows:
        tbp = rows
    grid = (pl.cdiv(rows, tbp),)         # ragged last block handled by Pallas

    out = pl.pallas_call(
        _mlp_kernel,
        out_shape=jax.ShapeDtypeStruct((rows, out_p), jnp.float32),
        grid=grid,
        in_specs=[
            # x: streamed along the packed-row axis -> auto double-buffered DMA pipeline.
            pl.BlockSpec((tbp, in_p), lambda i: (i, 0)),
            # Weights / biases: constant block index -> VMEM-resident across all grid steps.
            pl.BlockSpec((in_p, hid_p), lambda i: (0, 0)),
            pl.BlockSpec((1, hid_p), lambda i: (0, 0)),
            pl.BlockSpec((hid_p, hid_p), lambda i: (0, 0)),
            pl.BlockSpec((1, hid_p), lambda i: (0, 0)),
            pl.BlockSpec((hid_p, out_p), lambda i: (0, 0)),
            pl.BlockSpec((1, out_p), lambda i: (0, 0)),
        ],
        out_specs=pl.BlockSpec((tbp, out_p), lambda i: (i, 0)),
        compiler_params=pltpu.CompilerParams(
            # Batch steps are independent -> megacore-shardable on v7x.
            dimension_semantics=("parallel",),
        ),
    )(xpk, packed_params["w1"], packed_params["b1"],
      packed_params["w2"], packed_params["b2"],
      packed_params["w3"], packed_params["b3"])

    # (rows, pack*actions_n) -> (batch_r, actions_n) is a contiguous reshape; strip the tiny pack pad.
    q = out.reshape(batch_r, actions_n)
    return q[:batch] if batch_r != batch else q


def init_params(key, obs_len, hidden_size, actions_n):
    """Deterministic synthetic parameter init (nn.Linear shapes, stored transposed as [in, out])."""
    k1, k2, k3, k4, k5, k6 = jax.random.split(key, 6)
    s1 = 1.0 / jnp.sqrt(obs_len)
    s2 = 1.0 / jnp.sqrt(hidden_size)
    return {
        "w1": jax.random.uniform(k1, (obs_len, hidden_size), jnp.float32, -s1, s1),
        "b1": jax.random.uniform(k2, (1, hidden_size), jnp.float32, -s1, s1),
        "w2": jax.random.uniform(k3, (hidden_size, hidden_size), jnp.float32, -s2, s2),
        "b2": jax.random.uniform(k4, (1, hidden_size), jnp.float32, -s2, s2),
        "w3": jax.random.uniform(k5, (hidden_size, actions_n), jnp.float32, -s2, s2),
        "b3": jax.random.uniform(k6, (1, actions_n), jnp.float32, -s2, s2),
    }


def reference_forward(x, p):
    h = jnp.maximum(x @ p["w1"] + p["b1"], 0.0)
    h = jnp.maximum(h @ p["w2"] + p["b2"], 0.0)
    return h @ p["w3"] + p["b3"]


if __name__ == "__main__":
    # Small shapes consistent with the module: obs_len=8, hidden=32, actions=4, batch=2.
    obs_len, hidden_size, actions_n, batch = 8, 32, 4, 2

    key = jax.random.PRNGKey(0)
    k_x, k_p, k_x2 = jax.random.split(key, 3)
    params = init_params(k_p, obs_len, hidden_size, actions_n)

    # Block-diagonal packing built once, outside the jitted hot path (pack=4 for these shapes).
    pack = choose_pack(obs_len, hidden_size, actions_n)
    packed = jax.tree_util.tree_map(jax.block_until_ready, pack_params(params, pack))

    # 1) Tiny-batch inference case (batch=2 -> one packed row, single full block).
    x = jax.random.normal(k_x, (batch, obs_len), dtype=jnp.float32)
    out = jax.block_until_ready(q_network_forward(x, packed))
    ref = reference_forward(x, params)
    assert out.shape == (batch, actions_n)
    assert jnp.allclose(out, ref, atol=1e-4, rtol=1e-4), float(jnp.max(jnp.abs(out - ref)))

    # 2) Larger odd-sized batch: multi-step grid, resident weights, ragged last block (no big jnp.pad).
    big_batch = 518
    x_big = jax.random.normal(k_x2, (big_batch, obs_len), dtype=jnp.float32)
    out_big = jax.block_until_ready(q_network_forward(x_big, packed, tile_b=1024))
    ref_big = reference_forward(x_big, params)
    assert out_big.shape == (big_batch, actions_n)
    assert jnp.allclose(out_big, ref_big, atol=1e-4, rtol=1e-4), float(jnp.max(jnp.abs(out_big - ref_big)))

    print("KERNEL_OK")
</pallas_src>

<mosaic_0001>
module attributes {stable_mosaic.version = 11 : i64} {
  func.func @_mlp_kernel(%arg0: i32, %arg1: memref<1x32xf32, #tpu.memory_space<vmem>>, %arg2: memref<32x128xf32, #tpu.memory_space<vmem>>, %arg3: memref<1x128xf32, #tpu.memory_space<vmem>>, %arg4: memref<128x128xf32, #tpu.memory_space<vmem>>, %arg5: memref<1x128xf32, #tpu.memory_space<vmem>>, %arg6: memref<128x16xf32, #tpu.memory_space<vmem>>, %arg7: memref<1x16xf32, #tpu.memory_space<vmem>>, %arg8: memref<1x16xf32, #tpu.memory_space<vmem>>) attributes {dimension_semantics = [#tpu.dimension_semantics<parallel>], iteration_bounds = array<i64: 1>, scalar_prefetch = 0 : i64, scratch_operands = 0 : i64, tpu.core_type = #tpu.core_type<tc>, window_params = [{transform_indices = @transform_0, window_bounds = array<i64: 1, 32>}, {pipeline_mode = #tpu.pipeline_mode<synchronous>, transform_indices = @transform_1, window_bounds = array<i64: 32, 128>}, {pipeline_mode = #tpu.pipeline_mode<synchronous>, transform_indices = @transform_2, window_bounds = array<i64: 1, 128>}, {pipeline_mode = #tpu.pipeline_mode<synchronous>, transform_indices = @transform_3, window_bounds = array<i64: 128, 128>}, {pipeline_mode = #tpu.pipeline_mode<synchronous>, transform_indices = @transform_4, window_bounds = array<i64: 1, 128>}, {pipeline_mode = #tpu.pipeline_mode<synchronous>, transform_indices = @transform_5, window_bounds = array<i64: 128, 16>}, {pipeline_mode = #tpu.pipeline_mode<synchronous>, transform_indices = @transform_6, window_bounds = array<i64: 1, 16>}, {transform_indices = @transform_7, window_bounds = array<i64: 1, 16>}]} {
    %c0 = arith.constant 0 : index
    %c0_0 = arith.constant 0 : index
    %0 = vector.load %arg1[%c0, %c0_0] : memref<1x32xf32, #tpu.memory_space<vmem>>, vector<1x32xf32>
    %c0_1 = arith.constant 0 : index
    %c0_2 = arith.constant 0 : index
    %1 = vector.load %arg2[%c0_1, %c0_2] : memref<32x128xf32, #tpu.memory_space<vmem>>, vector<32x128xf32>
    %cst = arith.constant dense<0.000000e+00> : vector<1x128xf32>
    %2 = tpu.matmul %0, %1, %cst {dimension_numbers = #tpu.dot_dimension_numbers<[1], [0], [0], [1], [0, 0, 1, 1], [], []>} : vector<1x32xf32>, vector<32x128xf32>, vector<1x128xf32> -> vector<1x128xf32>
    %c0_3 = arith.constant 0 : index
    %c0_4 = arith.constant 0 : index
    %3 = vector.load %arg3[%c0_3, %c0_4] : memref<1x128xf32, #tpu.memory_space<vmem>>, vector<1x128xf32>
    %4 = arith.addf %2, %3 : vector<1x128xf32>
    %cst_5 = arith.constant 0.000000e+00 : f32
    %5 = vector.broadcast %cst_5 : f32 to vector<1x128xf32>
    %6 = arith.maximumf %4, %5 : vector<1x128xf32>
    %c0_6 = arith.constant 0 : index
    %c0_7 = arith.constant 0 : index
    %7 = vector.load %arg4[%c0_6, %c0_7] : memref<128x128xf32, #tpu.memory_space<vmem>>, vector<128x128xf32>
    %cst_8 = arith.constant dense<0.000000e+00> : vector<1x128xf32>
    %8 = tpu.matmul %6, %7, %cst_8 {dimension_numbers = #tpu.dot_dimension_numbers<[1], [0], [0], [1], [0, 0, 1, 1], [], []>} : vector<1x128xf32>, vector<128x128xf32>, vector<1x128xf32> -> vector<1x128xf32>
    %c0_9 = arith.constant 0 : index
    %c0_10 = arith.constant 0 : index
    %9 = vector.load %arg5[%c0_9, %c0_10] : memref<1x128xf32, #tpu.memory_space<vmem>>, vector<1x128xf32>
    %10 = arith.addf %8, %9 : vector<1x128xf32>
    %cst_11 = arith.constant 0.000000e+00 : f32
    %11 = vector.broadcast %cst_11 : f32 to vector<1x128xf32>
    %12 = arith.maximumf %10, %11 : vector<1x128xf32>
    %c0_12 = arith.constant 0 : index
    %c0_13 = arith.constant 0 : index
    %13 = vector.load %arg6[%c0_12, %c0_13] : memref<128x16xf32, #tpu.memory_space<vmem>>, vector<128x16xf32>
    %cst_14 = arith.constant dense<0.000000e+00> : vector<1x16xf32>
    %14 = tpu.matmul %12, %13, %cst_14 {dimension_numbers = #tpu.dot_dimension_numbers<[1], [0], [0], [1], [0, 0, 1, 1], [], []>} : vector<1x128xf32>, vector<128x16xf32>, vector<1x16xf32> -> vector<1x16xf32>
    %c0_15 = arith.constant 0 : index
    %c0_16 = arith.constant 0 : index
    %15 = vector.load %arg7[%c0_15, %c0_16] : memref<1x16xf32, #tpu.memory_space<vmem>>, vector<1x16xf32>
    %16 = arith.addf %14, %15 : vector<1x16xf32>
    %c0_17 = arith.constant 0 : index
    %c0_18 = arith.constant 0 : index
    %17 = vector.load %arg8[%c0_17, %c0_18] : memref<1x16xf32, #tpu.memory_space<vmem>>, vector<1x16xf32>
    tpu.vector_store %arg8[%c0_17, %c0_18], %16 {strides = array<i32>} : memref<1x16xf32, #tpu.memory_space<vmem>>, vector<1x16xf32>,
    return
  }
  func.func @transform_0(%arg0: i32) -> (i32, i32) {
    %c0_i32 = arith.constant 0 : i32
    %c0_i32_0 = arith.constant 0 : i32
    return %arg0, %c0_i32 : i32, i32
  }
  func.func @transform_1(%arg0: i32) -> (i32, i32) {
    %c0_i32 = arith.constant 0 : i32
    %c0_i32_0 = arith.constant 0 : i32
    %c0_i32_1 = arith.constant 0 : i32
    return %c0_i32, %c0_i32_0 : i32, i32
  }
  func.func @transform_2(%arg0: i32) -> (i32, i32) {
    %c0_i32 = arith.constant 0 : i32
    %c0_i32_0 = arith.constant 0 : i32
    %c0_i32_1 = arith.constant 0 : i32
    return %c0_i32, %c0_i32_0 : i32, i32
  }
  func.func @transform_3(%arg0: i32) -> (i32, i32) {
    %c0_i32 = arith.constant 0 : i32
    %c0_i32_0 = arith.constant 0 : i32
    %c0_i32_1 = arith.constant 0 : i32
    return %c0_i32, %c0_i32_0 : i32, i32
  }
  func.func @transform_4(%arg0: i32) -> (i32, i32) {
    %c0_i32 = arith.constant 0 : i32
    %c0_i32_0 = arith.constant 0 : i32
    %c0_i32_1 = arith.constant 0 : i32
    return %c0_i32, %c0_i32_0 : i32, i32
  }
  func.func @transform_5(%arg0: i32) -> (i32, i32) {
    %c0_i32 = arith.constant 0 : i32
    %c0_i32_0 = arith.constant 0 : i32
    %c0_i32_1 = arith.constant 0 : i32
    return %c0_i32, %c0_i32_0 : i32, i32
  }
  func.func @transform_6(%arg0: i32) -> (i32, i32) {
    %c0_i32 = arith.constant 0 : i32
    %c0_i32_0 = arith.constant 0 : i32
    %c0_i32_1 = arith.constant 0 : i32
    return %c0_i32, %c0_i32_0 : i32, i32
  }
  func.func @transform_7(%arg0: i32) -> (i32, i32) {
    %c0_i32 = arith.constant 0 : i32
    %c0_i32_0 = arith.constant 0 : i32
    return %arg0, %c0_i32 : i32, i32
  }
}

</mosaic_0001>

<llo_original>
// kernel: q_network_forward.1
$region0: #{q_network_forward.1}
  #allocation0 [shape = 'u32[]', space=smem, size = 0x4, offset = 0x4, fixed_abs, tag = 'smem constant byte address 0x4 - core index']
  #allocation1 [shape = 'u32[72,128]{1,0:T(1,128)}', space=vmem, size = 0x9000, scoped, tag = 'internal scratch']
  %s0 = inlined_call_operand.vmem [shape: f32[1,32], index: 0, kind: input, shape index: {}]
  %s1 = inlined_call_operand.hbm [shape: f32[32,128], index: 1, kind: input, shape index: {}]
  %s2 = inlined_call_operand.vmem [shape: f32[1,128], index: 2, kind: input, shape index: {}]
  %s3 = inlined_call_operand.vmem [shape: f32[128,128], index: 3, kind: input, shape index: {}]
  %s4 = inlined_call_operand.vmem [shape: f32[1,128], index: 4, kind: input, shape index: {}]
  %s5 = inlined_call_operand.vmem [shape: f32[128,16], index: 5, kind: input, shape index: {}]
  %s6 = inlined_call_operand.vmem [shape: f32[1,16], index: 6, kind: input, shape index: {}]
  %s7 = inlined_call_operand.vmem [shape: f32[1,16], index: 7, kind: output, shape index: {}]
  %s8 = sld [smem:[#allocation0]]
  $region42: #{q_network_forward.1} parent=0
    _
  %s10 = ssub.s32 1, %s8
  %s11 = scalar_select 0, %s10, %s8
  $region1: #{q_network_forward.1} parent=0
    #allocation2 [shape = 'u8[16384]{0}', space=vmem, size = 0x4000, scoped, tag = 'input window, operand 1, single buffered']
    #allocation3 [shape = 's32[1]{0}', space=sflag, size = 0x4, scoped, tag = 'scoped memory for q_network_forward.1']
    %12 = vsyncpa [#allocation3], 0
    // Predicated region
    $region2: #{q_network_forward.1} parent=1 // pred_check
      _
    $region3: #{q_network_forward.1} parent=1 // pred_check_branch
      %14 = sbr.rel (0) target = $region5
    $region4: #{q_network_forward.1} parent=1 // pred_region
      _
    $region5: #{q_network_forward.1} parent=1 // pred_fallthru
      _
    // Predicated region
    $region6: #{q_network_forward.1} parent=1 // pred_check
      _
    $region7: #{q_network_forward.1} parent=1 // pred_check_branch
      %16 = sbr.rel (0) target = $region9
    $region8: #{q_network_forward.1} parent=1 // pred_region
      %18 = vsyncadd [#allocation3], 0
      %s19 = sshll.u32 %s1, 4
      %s20 = int_to_ptr.hbm [resolvable:$true] %s19
      %s21 = sshll.u32 [#allocation2], 4
      %s22 = int_to_ptr.vmem [resolvable:$true] %s21
      %27 = dma.hbm_to_vmem [thread:$0]  %s20, 512, %s22, [#allocation3], 128, 128, 8
    $region9: #{q_network_forward.1} parent=1 // pred_fallthru
      _
    // Predicated region
    $region10: #{q_network_forward.1} parent=1 // pred_check
      _
    $region11: #{q_network_forward.1} parent=1 // pred_check_branch
      %29 = sbr.rel (0) target = $region13
    $region12: #{q_network_forward.1} parent=1 // pred_region
      _
    $region13: #{q_network_forward.1} parent=1 // pred_fallthru
      _
    // Predicated region
    $region14: #{q_network_forward.1} parent=1 // pred_check
      _
    $region15: #{q_network_forward.1} parent=1 // pred_check_branch
      %31 = sbr.rel (0) target = $region17
    $region16: #{q_network_forward.1} parent=1 // pred_region
      _
    $region17: #{q_network_forward.1} parent=1 // pred_fallthru
      _
    // Predicated region
    $region18: #{q_network_forward.1} parent=1 // pred_check
      _
    $region19: #{q_network_forward.1} parent=1 // pred_check_branch
      %33 = sbr.rel (0) target = $region21
    $region20: #{q_network_forward.1} parent=1 // pred_region
      _
    $region21: #{q_network_forward.1} parent=1 // pred_fallthru
      _
    // Predicated region
    $region22: #{q_network_forward.1} parent=1 // pred_check
      _
    $region23: #{q_network_forward.1} parent=1 // pred_check_branch
      %35 = sbr.rel (0) target = $region25
    $region24: #{q_network_forward.1} parent=1 // pred_region
      _
    $region25: #{q_network_forward.1} parent=1 // pred_fallthru
      _
    // Predicated region
    $region26: #{q_network_forward.1} parent=1 // pred_check
      _
    $region27: #{q_network_forward.1} parent=1 // pred_check_branch
      %37 = sbr.rel (0) target = $region29
    $region28: #{q_network_forward.1} parent=1 // pred_region
      _
    $region29: #{q_network_forward.1} parent=1 // pred_fallthru
      _
    // Predicated region
    $region30: #{q_network_forward.1} parent=1 // pred_check
      _
    $region31: #{q_network_forward.1} parent=1 // pred_check_branch
      %39 = sbr.rel (0) target = $region33
    $region32: #{q_network_forward.1} parent=1 // pred_region
      %41 = dma.done [#allocation3], 512
    $region33: #{q_network_forward.1} parent=1 // pred_fallthru
      _
    %v42 = vld [vmem:[%s0] sm:$0x1]
    %v43 = vld [vmem:[#allocation2] sm:$0xff]
    %v44 = vld [vmem:[#allocation2 + $0x8] sm:$0xff]
    %v45 = vld [vmem:[#allocation2 + $0x10] sm:$0xff]
    %v46 = vld [vmem:[#allocation2 + $0x18] sm:$0xff]
    %v47 = vld [vmem:[%s2] sm:$0x1]
    %vm48 = vcmask 261120
    %v50 = vsel %vm48, %v42, 0
    %52 = vmatpush.msra.mxu0 0.0
    %53 = vmatpush.msra.mxu0 0.0
    %54 = vmatpush.msra.mxu0 0.0
    %55 = vmatpush.msra.mxu0 0.0
    %56 = vmatpush.msra.mxu0 0.0
    %57 = vmatpush.msra.mxu0 0.0
    %58 = vmatpush.msra.mxu0 0.0
    %59 = vmatpush.msra.mxu0 0.0
    %60 = vmatpush.msra.mxu0 0.0
    %61 = vmatpush.msra.mxu0 0.0
    %62 = vmatpush.msra.mxu0 0.0
    %63 = vmatpush.msra.mxu0 0.0
    %64 = vmatpush.msra.mxu0 %v46
    %65 = vmatpush.msra.mxu0 %v45
    %66 = vmatpush.msra.mxu0 %v44
    %67 = vmatpush.msra.mxu0 %v43
    %68 = vmatmul.f32.gmra.mxu0 %v50
    %v69 = vpop.f32.mrf.mxu0
    %v70 = vadd.f32 %v47, %v69
    %71 = vdwg.mxu0
    %v72 = vmax.f32 %v70, 0.0
    %v73 = vld [vmem:[%s3] sm:$0xff]
    %v74 = vld [vmem:[%s3 + $0x8] sm:$0xff]
    %v75 = vld [vmem:[%s3 + $0x10] sm:$0xff]
    %v76 = vld [vmem:[%s3 + $0x18] sm:$0xff]
    %v77 = vld [vmem:[%s3 + $0x20] sm:$0xff]
    %v78 = vld [vmem:[%s3 + $0x28] sm:$0xff]
    %v79 = vld [vmem:[%s3 + $0x30] sm:$0xff]
    %v80 = vld [vmem:[%s3 + $0x38] sm:$0xff]
    %v81 = vld [vmem:[%s3 + $0x40] sm:$0xff]
    %v82 = vld [vmem:[%s3 + $0x48] sm:$0xff]
    %v83 = vld [vmem:[%s3 + $0x50] sm:$0xff]
    %v84 = vld [vmem:[%s3 + $0x58] sm:$0xff]
    %v85 = vld [vmem:[%s3 + $0x60] sm:$0xff]
    %v86 = vld [vmem:[%s3 + $0x68] sm:$0xff]
    %v87 = vld [vmem:[%s3 + $0x70] sm:$0xff]
    %v88 = vld [vmem:[%s3 + $0x78] sm:$0xff]
    %v89 = vld [vmem:[%s4] sm:$0x1]
    %90 = vmatpush.msra.mxu0 %v88
    %91 = vmatpush.msra.mxu0 %v87
    %92 = vmatpush.msra.mxu0 %v86
    %93 = vmatpush.msra.mxu0 %v85
    %94 = vmatpush.msra.mxu0 %v84
    %95 = vmatpush.msra.mxu0 %v83
    %96 = vmatpush.msra.mxu0 %v82
    %97 = vmatpush.msra.mxu0 %v81
    %98 = vmatpush.msra.mxu0 %v80
    %99 = vmatpush.msra.mxu0 %v79
    %100 = vmatpush.msra.mxu0 %v78
    %101 = vmatpush.msra.mxu0 %v77
    %102 = vmatpush.msra.mxu0 %v76
    %103 = vmatpush.msra.mxu0 %v75
    %104 = vmatpush.msra.mxu0 %v74
    %105 = vmatpush.msra.mxu0 %v73
    %106 = vmatmul.f32.gmra.mxu0 %v72
    %v107 = vpop.f32.mrf.mxu0
    %v108 = vadd.f32 %v89, %v107
    %109 = vdwg.mxu0
    %v110 = vmax.f32 %v108, 0.0
    %v111 = vld [vmem:[%s5] sm:$0xff]
    %v112 = vld [vmem:[%s5 + $0x8] sm:$0xff]
    %v113 = vld [vmem:[%s5 + $0x10] sm:$0xff]
    %v114 = vld [vmem:[%s5 + $0x18] sm:$0xff]
    %v115 = vld [vmem:[%s5 + $0x20] sm:$0xff]
    %v116 = vld [vmem:[%s5 + $0x28] sm:$0xff]
    %v117 = vld [vmem:[%s5 + $0x30] sm:$0xff]
    %v118 = vld [vmem:[%s5 + $0x38] sm:$0xff]
    %v119 = vld [vmem:[%s5 + $0x40] sm:$0xff]
    %v120 = vld [vmem:[%s5 + $0x48] sm:$0xff]
    %v121 = vld [vmem:[%s5 + $0x50] sm:$0xff]
    %v122 = vld [vmem:[%s5 + $0x58] sm:$0xff]
    %v123 = vld [vmem:[%s5 + $0x60] sm:$0xff]
    %v124 = vld [vmem:[%s5 + $0x68] sm:$0xff]
    %v125 = vld [vmem:[%s5 + $0x70] sm:$0xff]
    %v126 = vld [vmem:[%s5 + $0x78] sm:$0xff]
    %v127 = vld [vmem:[%s6] sm:$0x1]
    %128 = vmatpush.msra.mxu0 %v126
    %129 = vmatpush.msra.mxu0 %v125
    %130 = vmatpush.msra.mxu0 %v124
    %131 = vmatpush.msra.mxu0 %v123
    %132 = vmatpush.msra.mxu0 %v122
    %133 = vmatpush.msra.mxu0 %v121
    %134 = vmatpush.msra.mxu0 %v120
    %135 = vmatpush.msra.mxu0 %v119
    %136 = vmatpush.msra.mxu0 %v118
    %137 = vmatpush.msra.mxu0 %v117
    %138 = vmatpush.msra.mxu0 %v116
    %139 = vmatpush.msra.mxu0 %v115
    %140 = vmatpush.msra.mxu0 %v114
    %141 = vmatpush.msra.mxu0 %v113
    %142 = vmatpush.msra.mxu0 %v112
    %143 = vmatpush.msra.mxu0 %v111
    %144 = vmatmul.f32.gmra.mxu0 %v110
    %v145 = vpop.f32.mrf.mxu0
    %v146 = vadd.f32 %v127, %v145
    %147 = vdwg.mxu0
    %vm148 = vcmask 122880
    %149 = vst.msk [vmem:[%s7] sm:$0x1] %vm148, %v146
    // Predicated region
    $region34: #{q_network_forward.1} parent=1 // pred_check
      _
    $region35: #{q_network_forward.1} parent=1 // pred_check_branch
      %151 = sbr.rel (0) target = $region37
    $region36: #{q_network_forward.1} parent=1 // pred_region
      _
    $region37: #{q_network_forward.1} parent=1 // pred_fallthru
      _
    // Predicated region
    $region38: #{q_network_forward.1} parent=1 // pred_check
      _
    $region39: #{q_network_forward.1} parent=1 // pred_check_branch
      %153 = sbr.rel (0) target = $region41
    $region40: #{q_network_forward.1} parent=1 // pred_region
      _
    $region41: #{q_network_forward.1} parent=1 // pred_fallthru
      _
    %154 = vsyncpa [#allocation3], 1

</llo_original>
